<compile_context>
chip_gen: v7x
topology: tpu7x:2x2x1
jax: 0.10.0
libtpu: 0.0.40
codegen_flags: <defaults>
</compile_context>

<pallas_src>
import functools

import jax
import jax.numpy as jnp
from jax.experimental import pallas as pl
from jax.experimental.pallas import tpu as pltpu


def _round_up(x, m):
    return ((x + m - 1) // m) * m


def cosine_dist_kernel(x_ref, wt_ref, out_ref, *, scale, eps):
    # x_ref  : (TB, indim)    feature tile (resident across out-tile axis)
    # wt_ref : (indim, TN)    effective (weight-normed) classifier weight, transposed
    # out_ref: (TB, TN)       scaled cosine scores
    x = x_ref[...].astype(jnp.float32)

    # Per-row L2 norm in f32; eps added to the norm itself (matches torch: x / (||x|| + 1e-5)).
    ss = jnp.sum(x * x, axis=-1, keepdims=True)                      # (TB, 1), VPU+XLU
    inv = 1.0 / (jnp.sqrt(ss) + eps)                                 # EUP sqrt, exact div
    x_normalized = x * inv

    scores = jnp.dot(x_normalized, wt_ref[...].astype(jnp.float32),
                     preferred_element_type=jnp.float32)             # MXU, f32 accumulate
    out_ref[...] = (scale * scores).astype(out_ref.dtype)


def cosine_dist_forward(x, weight_v, weight_g, *, block_b=128, block_n=512):
    """cosineDist.forward.

    x        : (B, indim)                  input features (f32 or bf16)
    weight_v : (outdim, indim)             WeightNorm 'v' parameter of self.L
    weight_g : (outdim,) or (outdim, 1)    WeightNorm 'g' parameter of self.L
    returns  : (B, outdim) f32 scores
    """
    B, indim = x.shape
    outdim = weight_v.shape[0]
    scale = 2.0 if outdim <= 200 else 10.0

    # WeightNorm(dim=0) hook: W = g * v / ||v||_2 per output row. Batch-independent,
    # so it is precomputed off the kernel's critical path (single tiny XLA fusion).
    wg = weight_g.reshape(outdim, 1).astype(jnp.float32)
    wv = weight_v.astype(jnp.float32)
    w_eff = wg * wv / jnp.sqrt(jnp.sum(wv * wv, axis=1, keepdims=True))
    wt = w_eff.T                                                      # (indim, outdim)

    # Lane-dense output: pad outdim to a multiple of 128 with zero weight columns
    # (zero columns -> zero scores, sliced off afterwards).
    outdim_pad = _round_up(outdim, 128)
    wt_pad = jnp.zeros((indim, outdim_pad), jnp.float32).at[:, :outdim].set(wt)

    # Tile the out axis so the resident weight slab stays VMEM-friendly.
    tn = min(block_n, outdim_pad)
    n_pad = _round_up(outdim_pad, tn)
    if n_pad != outdim_pad:
        wt_pad = jnp.zeros((indim, n_pad), jnp.float32).at[:, :outdim_pad].set(wt_pad)

    # Tile the batch axis; pad B with zero rows (sliced off afterwards; zero rows are
    # harmless: sum-of-squares 0 -> x/(0+eps) = 0 -> zero scores).
    tb = min(block_b, _round_up(B, 8))
    b_pad = _round_up(B, tb)
    x_pad = jnp.zeros((b_pad, indim), x.dtype).at[:B, :].set(x)

    kernel = functools.partial(cosine_dist_kernel, scale=scale, eps=1e-5)

    scores_pad = pl.pallas_call(
        kernel,
        out_shape=jax.ShapeDtypeStruct((b_pad, n_pad), jnp.float32),
        grid_spec=pltpu.PrefetchScalarGridSpec(
            num_scalar_prefetch=0,
            grid=(b_pad // tb, n_pad // tn),
            in_specs=[
                pl.BlockSpec((tb, indim), lambda i, j: (i, 0)),   # x tile, resident over j
                pl.BlockSpec((indim, tn), lambda i, j: (0, j)),   # weight slab, resident over i
            ],
            out_specs=pl.BlockSpec((tb, tn), lambda i, j: (i, j)),
        ),
        compiler_params=pltpu.CompilerParams(
            dimension_semantics=("parallel", "parallel"),         # megacore on v7x
            vmem_limit_bytes=64 << 20),
    )(x_pad, wt_pad)

    return scores_pad[:B, :outdim]


if __name__ == "__main__":
    # Small shapes consistent with a few-shot classification head:
    # batch=2, indim=64 (feature dim), outdim=5 (n_way)  -> scale_factor = 2.
    B, indim, outdim = 2, 64, 5

    key = jax.random.PRNGKey(0)
    k1, k2, k3 = jax.random.split(key, 3)

    x = jax.random.normal(k1, (B, indim), dtype=jnp.float32)
    weight_v = jax.random.normal(k2, (outdim, indim), dtype=jnp.float32) * 0.1
    weight_g = 1.0 + jax.random.uniform(k3, (outdim,), dtype=jnp.float32)

    scores = cosine_dist_forward(x, weight_v, weight_g)
    jax.block_until_ready(scores)

    # Pure-JAX reference (mirrors the PyTorch forward incl. the WeightNorm hook).
    x_norm = jnp.sqrt(jnp.sum(x * x, axis=1, keepdims=True))
    x_normalized = x / (x_norm + 1e-5)
    w_eff = weight_g.reshape(-1, 1) * weight_v / jnp.linalg.norm(
        weight_v, axis=1, keepdims=True)
    scale = 2.0 if outdim <= 200 else 10.0
    scores_ref = scale * (x_normalized @ w_eff.T)

    assert scores.shape == (B, outdim)
    assert jnp.allclose(scores, scores_ref, atol=1e-4, rtol=1e-4)

    print("KERNEL_OK")
</pallas_src>

<mosaic_0001>
module attributes {stable_mosaic.version = 11 : i64} {
  func.func @cosine_dist_kernel(%arg0: i32, %arg1: i32, %arg2: memref<8x64xf32, #tpu.memory_space<vmem>>, %arg3: memref<64x128xf32, #tpu.memory_space<vmem>>, %arg4: memref<8x128xf32, #tpu.memory_space<vmem>>) attributes {dimension_semantics = [#tpu.dimension_semantics<parallel>, #tpu.dimension_semantics<parallel>], iteration_bounds = array<i64: 1, 1>, scalar_prefetch = 0 : i64, scratch_operands = 0 : i64, tpu.core_type = #tpu.core_type<tc>, window_params = [{transform_indices = @transform_0, window_bounds = array<i64: 8, 64>}, {transform_indices = @transform_1, window_bounds = array<i64: 64, 128>}, {transform_indices = @transform_2, window_bounds = array<i64: 8, 128>}]} {
    %c0 = arith.constant 0 : index
    %c0_0 = arith.constant 0 : index
    %0 = vector.load %arg2[%c0, %c0_0] : memref<8x64xf32, #tpu.memory_space<vmem>>, vector<8x64xf32>
    %1 = arith.mulf %0, %0 : vector<8x64xf32>
    %cst = arith.constant dense<0.000000e+00> : vector<8xf32>
    %2 = vector.multi_reduction <add>, %1, %cst [1] : vector<8x64xf32> to vector<8xf32>
    %3 = vector.shape_cast %2 : vector<8xf32> to vector<8x1xf32>
    %4 = math.sqrt %3 : vector<8x1xf32>
    %cst_1 = arith.constant 9.99999974E-6 : f32
    %5 = vector.broadcast %cst_1 : f32 to vector<8x1xf32>
    %6 = arith.addf %4, %5 : vector<8x1xf32>
    %cst_2 = arith.constant 1.000000e+00 : f32
    %7 = vector.broadcast %cst_2 : f32 to vector<8x1xf32>
    %8 = arith.divf %7, %6 : vector<8x1xf32>
    %9 = vector.broadcast %8 : vector<8x1xf32> to vector<8x64xf32>
    %10 = arith.mulf %0, %9 : vector<8x64xf32>
    %c0_3 = arith.constant 0 : index
    %c0_4 = arith.constant 0 : index
    %11 = vector.load %arg3[%c0_3, %c0_4] : memref<64x128xf32, #tpu.memory_space<vmem>>, vector<64x128xf32>
    %cst_5 = arith.constant dense<0.000000e+00> : vector<8x128xf32>
    %12 = tpu.matmul %10, %11, %cst_5 {dimension_numbers = #tpu.dot_dimension_numbers<[1], [0], [0], [1], [0, 0, 1, 1], [], []>} : vector<8x64xf32>, vector<64x128xf32>, vector<8x128xf32> -> vector<8x128xf32>
    %cst_6 = arith.constant 2.000000e+00 : f32
    %13 = vector.broadcast %cst_6 : f32 to vector<8x128xf32>
    %14 = arith.mulf %13, %12 : vector<8x128xf32>
    %c0_7 = arith.constant 0 : index
    %c0_8 = arith.constant 0 : index
    %15 = vector.load %arg4[%c0_7, %c0_8] : memref<8x128xf32, #tpu.memory_space<vmem>>, vector<8x128xf32>
    tpu.vector_store %arg4[%c0_7, %c0_8], %14 {strides = array<i32>} : memref<8x128xf32, #tpu.memory_space<vmem>>, vector<8x128xf32>,
    return
  }
  func.func @transform_0(%arg0: i32, %arg1: i32) -> (i32, i32) {
    %c0_i32 = arith.constant 0 : i32
    %c0_i32_0 = arith.constant 0 : i32
    return %arg0, %c0_i32 : i32, i32
  }
  func.func @transform_1(%arg0: i32, %arg1: i32) -> (i32, i32) {
    %c0_i32 = arith.constant 0 : i32
    %c0_i32_0 = arith.constant 0 : i32
    return %c0_i32, %arg1 : i32, i32
  }
  func.func @transform_2(%arg0: i32, %arg1: i32) -> (i32, i32) {
    %c0_i32 = arith.constant 0 : i32
    return %arg0, %arg1 : i32, i32
  }
}

</mosaic_0001>

<llo_original>
// kernel: tpu_custom_call.1
$region0: #{tpu_custom_call.1}
  #allocation0 [shape = 'u32[]', space=smem, size = 0x4, offset = 0x4, fixed_abs, tag = 'smem constant byte address 0x4 - core index']
  #allocation1 [shape = 'u32[144,128]{1,0:T(1,128)}', space=vmem, size = 0x12000, scoped, tag = 'internal scratch']
  %s0 = inlined_call_operand.hbm [shape: f32[8,64], index: 0, kind: input, shape index: {}]
  %s1 = inlined_call_operand.hbm [shape: f32[64,128], index: 1, kind: input, shape index: {}]
  %s2 = inlined_call_operand.hbm [shape: f32[8,128], index: 2, kind: output, shape index: {}]
  %s3 = sld [smem:[#allocation0]]
  $region26: #{tpu_custom_call.1} parent=0
    _
  %s5 = ssub.s32 1, %s3
  %s6 = scalar_select 0, %s5, %s3
  $region1: #{tpu_custom_call.1} parent=0
    #allocation2 [shape = 'u8[4096]{0}', space=vmem, size = 0x1000, scoped, tag = 'input window, operand 0, single buffered']
    #allocation3 [shape = 's32[1]{0}', space=sflag, size = 0x4, scoped, tag = 'scoped memory for tpu_custom_call.1']
    #allocation4 [shape = 's32[1]{0}', space=sflag, size = 0x4, scoped, tag = 'scoped memory for tpu_custom_call.1']
    #allocation5 [shape = 'u8[32768]{0}', space=vmem, size = 0x8000, scoped, tag = 'input window, operand 1, single buffered']
    #allocation6 [shape = 's32[1]{0}', space=sflag, size = 0x4, scoped, tag = 'scoped memory for tpu_custom_call.1']
    #allocation7 [shape = 'u8[4096]{0}', space=vmem, size = 0x1000, scoped, tag = 'output window, operand 0, single buffered']
    %7 = vsyncpa [#allocation3], 0
    %8 = vsyncpa [#allocation6], 0
    %9 = vsyncpa [#allocation4], 0
    // Predicated region
    $region2: #{tpu_custom_call.1} parent=1 // pred_check
      _
    $region3: #{tpu_custom_call.1} parent=1 // pred_check_branch
      %11 = sbr.rel (0) target = $region5
    $region4: #{tpu_custom_call.1} parent=1 // pred_region
      %s13 = ssub.s32 128, 128
      %14 = vsyncadd [#allocation3], %s13
      %s16 = sshll.u32 [#allocation2], 4
      %s17 = int_to_ptr.vmem [resolvable:$true] %s16
      %19 = dma.hbm_to_vmem [thread:$0]  %s0, 128, %s17, [#allocation3]
    $region5: #{tpu_custom_call.1} parent=1 // pred_fallthru
      _
    // Predicated region
    $region6: #{tpu_custom_call.1} parent=1 // pred_check
      _
    $region7: #{tpu_custom_call.1} parent=1 // pred_check_branch
      %21 = sbr.rel (0) target = $region9
    $region8: #{tpu_custom_call.1} parent=1 // pred_region
      %s23 = ssub.s32 1024, 1024
      %24 = vsyncadd [#allocation6], %s23
      %s25 = sshll.u32 [#allocation5], 4
      %s26 = int_to_ptr.vmem [resolvable:$true] %s25
      %31 = dma.hbm_to_vmem [thread:$0]  %s1, 1024, %s26, [#allocation6], 128, 128, 8
    $region9: #{tpu_custom_call.1} parent=1 // pred_fallthru
      _
    // Predicated region
    $region10: #{tpu_custom_call.1} parent=1 // pred_check
      _
    $region11: #{tpu_custom_call.1} parent=1 // pred_check_branch
      %33 = sbr.rel (0) target = $region13
    $region12: #{tpu_custom_call.1} parent=1 // pred_region
      %34 = dma.done [#allocation3], 128
    $region13: #{tpu_custom_call.1} parent=1 // pred_fallthru
      _
    // Predicated region
    $region14: #{tpu_custom_call.1} parent=1 // pred_check
      _
    $region15: #{tpu_custom_call.1} parent=1 // pred_check_branch
      %36 = sbr.rel (0) target = $region17
    $region16: #{tpu_custom_call.1} parent=1 // pred_region
      %37 = dma.done [#allocation6], 1024
    $region17: #{tpu_custom_call.1} parent=1 // pred_fallthru
      _
    %v38 = vld [vmem:[#allocation2] sm:$0xff]
    %v39 = vmul.f32 %v38, %v38
    %vm40 = vcmask 523264
    %v41 = vsel %vm40, %v39, 0.0
    %42 = vadd.xlane.f32.xlu0 %v41
    %v43 = vpop.xlane.xlu0 %42
    %v44 = vrsqrt.pop %v43
    %v45 = vmul.f32 %v43, %v44
    %vm46 = vcmp.eq.f32.partialorder %v43, inf
    %v47 = vsel %vm46, %v43, %v45
    %vm48 = vcmp.eq.f32.partialorder %v43, 0.0
    %v49 = vand.u32 %v43, 2147483648
    %v50 = vsel %vm48, %v49, %v47
    %v51 = vadd.f32 %v50, 1e-05
    %v52 = vrcp.pop %v51
    %v53 = vmul.f32 1.0, %v52
    %v54 = vmul.f32 %v38, %v53
    %v55 = vld [vmem:[#allocation5] sm:$0xff]
    %v56 = vld [vmem:[#allocation5 + $0x8] sm:$0xff]
    %v57 = vld [vmem:[#allocation5 + $0x10] sm:$0xff]
    %v58 = vld [vmem:[#allocation5 + $0x18] sm:$0xff]
    %v59 = vld [vmem:[#allocation5 + $0x20] sm:$0xff]
    %v60 = vld [vmem:[#allocation5 + $0x28] sm:$0xff]
    %v61 = vld [vmem:[#allocation5 + $0x30] sm:$0xff]
    %v62 = vld [vmem:[#allocation5 + $0x38] sm:$0xff]
    %v64 = vsel %vm40, %v54, 0
    %66 = vmatprep.subr.mxu0 0.0
    %67 = vmatpush1.msra.mxu0 %v55
    %68 = vmatprep.subr.mxu0 0.0
    %69 = vmatpush1.msra.mxu0 %v56
    %70 = vmatprep.subr.mxu0 0.0
    %71 = vmatpush1.msra.mxu0 %v57
    %72 = vmatprep.subr.mxu0 0.0
    %73 = vmatpush1.msra.mxu0 %v58
    %74 = vmatprep.subr.mxu0 0.0
    %75 = vmatpush1.msra.mxu0 %v59
    %76 = vmatprep.subr.mxu0 0.0
    %77 = vmatpush1.msra.mxu0 %v60
    %78 = vmatprep.subr.mxu0 0.0
    %79 = vmatpush1.msra.mxu0 %v61
    %80 = vmatprep.subr.mxu0 0.0
    %81 = vmatpush1.msra.mxu0 %v62
    %82 = vmatprep.subr.mxu0 0.0
    %83 = vmatpush1.msra.mxu0 0.0
    %84 = vmatprep.subr.mxu0 0.0
    %85 = vmatpush1.msra.mxu0 0.0
    %86 = vmatprep.subr.mxu0 0.0
    %87 = vmatpush1.msra.mxu0 0.0
    %88 = vmatprep.subr.mxu0 0.0
    %89 = vmatpush1.msra.mxu0 0.0
    %90 = vmatprep.subr.mxu0 0.0
    %91 = vmatpush1.msra.mxu0 0.0
    %92 = vmatprep.subr.mxu0 0.0
    %93 = vmatpush1.msra.mxu0 0.0
    %94 = vmatprep.subr.mxu0 0.0
    %95 = vmatpush1.msra.mxu0 0.0
    %96 = vmatprep.subr.mxu0 0.0
    %97 = vmatpush1.msra.mxu0 0.0
    %98 = vmatprep.subr.mxu0 0.0
    %99 = vmatpush1.msra.mxu0 0.0
    %100 = vmatprep.subr.mxu0 0.0
    %101 = vmatpush1.msra.mxu0 0.0
    %102 = vmatprep.subr.mxu0 0.0
    %103 = vmatpush1.msra.mxu0 0.0
    %104 = vmatprep.subr.mxu0 0.0
    %105 = vmatpush1.msra.mxu0 0.0
    %106 = vmatprep.subr.mxu0 0.0
    %107 = vmatpush1.msra.mxu0 0.0
    %108 = vmatprep.subr.mxu0 0.0
    %109 = vmatpush1.msra.mxu0 0.0
    %110 = vmatprep.subr.mxu0 0.0
    %111 = vmatpush1.msra.mxu0 0.0
    %112 = vmatprep.subr.mxu0 0.0
    %113 = vmatpush1.msra.mxu0 0.0
    %114 = vmatprep.subr.mxu0 0.0
    %115 = vmatpush1.msra.mxu0 0.0
    %116 = vmatprep.subr.mxu0 0.0
    %117 = vmatpush1.msra.mxu0 0.0
    %118 = vmatprep.subr.mxu0 0.0
    %119 = vmatpush1.msra.mxu0 0.0
    %120 = vmatprep.subr.mxu0 0.0
    %121 = vmatpush1.msra.mxu0 0.0
    %122 = vmatprep.subr.mxu0 0.0
    %123 = vmatpush1.msra.mxu0 0.0
    %124 = vmatprep.subr.mxu0 0.0
    %125 = vmatpush1.msra.mxu0 0.0
    %126 = vmatprep.subr.mxu0 0.0
    %127 = vmatpush1.msra.mxu0 0.0
    %128 = vmatprep.subr.mxu0 0.0
    %129 = vmatpush1.msra.mxu0 0.0
    %130 = vmatprep.mubr.f32.mxu0 0.0
    %131 = vmatmul.mubr.f32.gmra.mrb[0].mxu0 %v64
    %v132 = vpop.f32.mrb[0].mxu0
    %v133 = vadd.f32 0.0, %v132
    %v134 = vpop.f32.mrb[0].mxu0
    %135 = vdwg.mxu0
    %v136 = vmul.f32 %v133, 2.0
    %137 = vst [vmem:[#allocation7] sm:$0xff] %v136
    // Predicated region
    $region18: #{tpu_custom_call.1} parent=1 // pred_check
      _
    $region19: #{tpu_custom_call.1} parent=1 // pred_check_branch
      %139 = sbr.rel (0) target = $region21
    $region20: #{tpu_custom_call.1} parent=1 // pred_region
      %s141 = ssub.s32 128, 128
      %142 = vsyncadd [#allocation4], %s141
      %s144 = sshll.u32 [#allocation7], 4
      %s145 = int_to_ptr.vmem [resolvable:$true] %s144
      %147 = dma.vmem_to_hbm [thread:$0]  %s145, 128, %s2, [#allocation4]
    $region21: #{tpu_custom_call.1} parent=1 // pred_fallthru
      _
    // Predicated region
    $region22: #{tpu_custom_call.1} parent=1 // pred_check
      _
    $region23: #{tpu_custom_call.1} parent=1 // pred_check_branch
      %149 = sbr.rel (0) target = $region25
    $region24: #{tpu_custom_call.1} parent=1 // pred_region
      %150 = dma.done [#allocation4], 128
    $region25: #{tpu_custom_call.1} parent=1 // pred_fallthru
      _
    %151 = vsyncpa [#allocation3], 1
    %152 = vsyncpa [#allocation6], 1
    %153 = vsyncpa [#allocation4], 1

</llo_original>
